<compile_context>
chip_gen: v6e
topology: v6e:2x2x1
jax: 0.10.0
libtpu: 0.0.40
codegen_flags: <defaults>
</compile_context>

<pallas_src>
import functools

import jax
import jax.numpy as jnp
from jax import lax
from jax.experimental import pallas as pl
from jax.experimental.pallas import tpu as pltpu


def _ceil_div(a, b):
    return -(-a // b)


def _round_up(a, b):
    return _ceil_div(a, b) * b


def _focal_loss_kernel(logits_ref, tgt_ref, alpha_ref, out_ref, *, gamma):
    """Accumulate per-row focal-loss terms into the resident output block."""
    i = pl.program_id(1)  # inner (reduction) grid axis

    @pl.when(i == 0)
    def _():
        out_ref[...] = jnp.zeros_like(out_ref)

    x = logits_ref[...].astype(jnp.float32)        # (TN, C)
    t = tgt_ref[...]                               # (TN, 1) int32 (-1 == padding)
    alpha = alpha_ref[...].astype(jnp.float32)     # (1, C)

    # Numerically-stable log-sum-exp over classes.
    m = jnp.max(x, axis=-1, keepdims=True)                      # (TN, 1)
    sum_exp = jnp.sum(jnp.exp(x - m), axis=-1, keepdims=True)   # (TN, 1)
    lse = m + jnp.log(sum_exp)

    # One-hot gather of the target logit and alpha[target]. Padded rows have
    # t == -1 -> all-zero one-hot -> alpha_t == 0 -> zero contribution.
    # TODO(synk): for very small C (< 128) the class axis underfills the
    # 128-lane vreg; a lane-packing reshape (tile_n/k, k*C) with segmented
    # reductions would recover VPU throughput in that regime.
    col = lax.broadcasted_iota(jnp.int32, x.shape, 1)            # (TN, C)
    onehot = (col == t).astype(jnp.float32)                      # (TN, C)
    logit_t = jnp.sum(onehot * x, axis=-1, keepdims=True)        # (TN, 1)
    alpha_t = jnp.sum(onehot * alpha, axis=-1, keepdims=True)    # (TN, 1)

    ce = lse - logit_t
    # pt = exp(-ce), rewritten to reuse sum_exp (avoids a second exp chain).
    # approx=False keeps bit-level accuracy; approx=True is OK if ~1e-3
    # relative loss error is acceptable.
    pt = jnp.exp(logit_t - m) * pl.reciprocal(sum_exp, approx=False)

    one_minus_pt = 1.0 - pt
    g = float(gamma)
    if g == int(g) and g >= 0:
        focal = lax.integer_pow(one_minus_pt, int(g))            # VPU multiplies
    else:
        focal = jnp.maximum(one_minus_pt, 0.0) ** jnp.float32(g)  # clamp: no NaN

    # Plain vector add into the resident (TN, 1) accumulator; the final reduce
    # and the division by N happen once, in the wrapper.
    out_ref[...] += alpha_t * focal * ce


def focal_loss(inputs, targets, alpha, gamma=2, *, tile_n=None, num_shards=None,
               vmem_limit_bytes=None):
    """inputs: (N, C) float, targets: (N,) int, alpha: (C,) float -> scalar f32."""
    N, C = inputs.shape
    itemsize = jnp.dtype(inputs.dtype).itemsize

    # Row shards: matches v7x's 2 TensorCores; harmless (serial) on v5e/v6e.
    if num_shards is None:
        num_shards = 2
    num_shards = max(1, min(num_shards, _ceil_div(N, 8)))

    # Row-tile: ~4 MiB of logits per pipeline buffer (double-buffered -> ~8 MiB),
    # capped at 2048 rows and at what one shard actually needs.
    if tile_n is None:
        tile_n = (4 * 1024 * 1024) // max(1, C * itemsize)
        tile_n = max(8, min(2048, (tile_n // 8) * 8))
    rows_per_shard = _round_up(_ceil_div(N, num_shards), 8)
    tile_n = max(8, (min(tile_n, rows_per_shard) // 8) * 8)
    tiles_per_shard = _ceil_div(rows_per_shard, tile_n)
    rows_per_shard = tiles_per_shard * tile_n
    n_pad = num_shards * rows_per_shard

    # Scoped-VMEM budget: double-buffered inputs + resident output, with headroom.
    need = 2 * (tile_n * C * itemsize + tile_n * 4 + C * 4) + 2 * tile_n * 4
    if vmem_limit_bytes is None:
        vmem_limit_bytes = int(min(max(4 * need, 16 * 1024 * 1024),
                                   32 * 1024 * 1024))

    pad = n_pad - N
    logits_p = jnp.pad(inputs, ((0, pad), (0, 0))) if pad else inputs
    targets_i = targets.astype(jnp.int32)
    if pad:
        targets_i = jnp.pad(targets_i, ((0, pad),), constant_values=-1)
    targets2d = targets_i.reshape(n_pad, 1)
    alpha2d = alpha.astype(jnp.float32).reshape(1, C)

    kernel = functools.partial(_focal_loss_kernel, gamma=gamma)

    partials = pl.pallas_call(
        kernel,
        out_shape=jax.ShapeDtypeStruct((num_shards * tile_n, 1), jnp.float32),
        grid_spec=pltpu.PrefetchScalarGridSpec(
            num_scalar_prefetch=0,
            grid=(num_shards, tiles_per_shard),
            in_specs=[
                pl.BlockSpec((tile_n, C),
                             lambda p, i: (p * tiles_per_shard + i, 0)),  # logits
                pl.BlockSpec((tile_n, 1),
                             lambda p, i: (p * tiles_per_shard + i, 0)),  # targets
                pl.BlockSpec((1, C), lambda p, i: (0, 0)),                # alpha
            ],
            out_specs=pl.BlockSpec((tile_n, 1), lambda p, i: (p, 0)),     # per-shard acc
        ),
        compiler_params=pltpu.CompilerParams(
            dimension_semantics=("parallel", "arbitrary"),
            vmem_limit_bytes=vmem_limit_bytes,
        ),
    )(logits_p, targets2d, alpha2d)

    # Single reduce + single divide by the true N (padded rows contribute 0).
    return jnp.sum(partials) / jnp.float32(N)


def focal_loss_ref(inputs, targets, alpha, gamma=2):
    """Pure-JAX reference matching torch semantics."""
    x = inputs.astype(jnp.float32)
    lse = jax.nn.logsumexp(x, axis=-1)
    ce = lse - jnp.take_along_axis(x, targets[:, None], axis=-1)[:, 0]
    pt = jnp.exp(-ce)
    return jnp.mean(alpha[targets] * (1.0 - pt) ** gamma * ce)


if __name__ == "__main__":
    key = jax.random.PRNGKey(0)
    C = 8
    gamma = 2
    alpha = jnp.linspace(0.5, 1.5, C, dtype=jnp.float32)  # per-class weights (self.alpha)

    ok = True
    for N in (32, 13):  # second case exercises padding / ragged shard handling
        k1, k2, key = jax.random.split(key, 3)
        logits = jax.random.normal(k1, (N, C), dtype=jnp.float32)
        targets = jax.random.randint(k2, (N,), 0, C, dtype=jnp.int32)

        loss = focal_loss(logits, targets, alpha, gamma=gamma)
        loss = jax.block_until_ready(loss)
        ref = focal_loss_ref(logits, targets, alpha, gamma=gamma)
        if not jnp.allclose(loss, ref, rtol=1e-5, atol=1e-5):
            ok = False
            print("MISMATCH", N, loss, ref)

    if ok:
        print("KERNEL_OK")
</pallas_src>

<mosaic_0001>
module attributes {stable_mosaic.version = 11 : i64} {
  func.func @_focal_loss_kernel(%arg0: i32, %arg1: i32, %arg2: memref<16x8xf32, #tpu.memory_space<vmem>>, %arg3: memref<16x1xi32, #tpu.memory_space<vmem>>, %arg4: memref<1x8xf32, #tpu.memory_space<vmem>>, %arg5: memref<16x1xf32, #tpu.memory_space<vmem>>) attributes {dimension_semantics = [#tpu.dimension_semantics<parallel>, #tpu.dimension_semantics<arbitrary>], iteration_bounds = array<i64: 2, 1>, scalar_prefetch = 0 : i64, scratch_operands = 0 : i64, tpu.core_type = #tpu.core_type<tc>, window_params = [{transform_indices = @transform_0, window_bounds = array<i64: 16, 8>}, {transform_indices = @transform_1, window_bounds = array<i64: 16, 1>}, {pipeline_mode = #tpu.pipeline_mode<synchronous>, transform_indices = @transform_2, window_bounds = array<i64: 1, 8>}, {transform_indices = @transform_3, window_bounds = array<i64: 16, 1>}]} {
    %c0_i32 = arith.constant 0 : i32
    %0 = arith.cmpi eq, %arg1, %c0_i32 : i32
    %1 = arith.extui %0 : i1 to i32
    %c0_i32_0 = arith.constant 0 : i32
    %2 = arith.cmpi ne, %1, %c0_i32_0 : i32
    scf.if %2 {
      %cst_14 = arith.constant 0.000000e+00 : f32
      %40 = vector.broadcast %cst_14 : f32 to vector<16x1xf32>
      %c0_15 = arith.constant 0 : index
      %c0_16 = arith.constant 0 : index
      %41 = vector.load %arg5[%c0_15, %c0_16] : memref<16x1xf32, #tpu.memory_space<vmem>>, vector<16x1xf32>
      tpu.vector_store %arg5[%c0_15, %c0_16], %40 {strides = array<i32>} : memref<16x1xf32, #tpu.memory_space<vmem>>, vector<16x1xf32>,
    } else {
    }
    %c0 = arith.constant 0 : index
    %c0_1 = arith.constant 0 : index
    %3 = vector.load %arg2[%c0, %c0_1] : memref<16x8xf32, #tpu.memory_space<vmem>>, vector<16x8xf32>
    %c0_2 = arith.constant 0 : index
    %c0_3 = arith.constant 0 : index
    %4 = vector.load %arg3[%c0_2, %c0_3] : memref<16x1xi32, #tpu.memory_space<vmem>>, vector<16x1xi32>
    %c0_4 = arith.constant 0 : index
    %c0_5 = arith.constant 0 : index
    %5 = vector.load %arg4[%c0_4, %c0_5] : memref<1x8xf32, #tpu.memory_space<vmem>>, vector<1x8xf32>
    %cst = arith.constant dense<0xFF800000> : vector<16xf32>
    %6 = vector.multi_reduction <maximumf>, %3, %cst [1] : vector<16x8xf32> to vector<16xf32>
    %7 = vector.shape_cast %6 : vector<16xf32> to vector<16x1xf32>
    %8 = vector.broadcast %7 : vector<16x1xf32> to vector<16x8xf32>
    %9 = arith.subf %3, %8 : vector<16x8xf32>
    %10 = math.exp %9 : vector<16x8xf32>
    %cst_6 = arith.constant dense<0.000000e+00> : vector<16xf32>
    %11 = vector.multi_reduction <add>, %10, %cst_6 [1] : vector<16x8xf32> to vector<16xf32>
    %12 = vector.shape_cast %11 : vector<16xf32> to vector<16x1xf32>
    %13 = math.log %12 : vector<16x1xf32>
    %14 = arith.addf %7, %13 : vector<16x1xf32>
    %15 = tpu.iota {dimensions = array<i32: 1>} : vector<16x8xi32>
    %16 = vector.broadcast %4 : vector<16x1xi32> to vector<16x8xi32>
    %17 = arith.cmpi eq, %15, %16 : vector<16x8xi32>
    %18 = arith.extui %17 : vector<16x8xi1> to vector<16x8xi32>
    %19 = arith.sitofp %18 : vector<16x8xi32> to vector<16x8xf32>
    %20 = arith.mulf %19, %3 : vector<16x8xf32>
    %cst_7 = arith.constant dense<0.000000e+00> : vector<16xf32>
    %21 = vector.multi_reduction <add>, %20, %cst_7 [1] : vector<16x8xf32> to vector<16xf32>
    %22 = vector.shape_cast %21 : vector<16xf32> to vector<16x1xf32>
    %23 = vector.broadcast %5 : vector<1x8xf32> to vector<16x8xf32>
    %24 = arith.mulf %19, %23 : vector<16x8xf32>
    %cst_8 = arith.constant dense<0.000000e+00> : vector<16xf32>
    %25 = vector.multi_reduction <add>, %24, %cst_8 [1] : vector<16x8xf32> to vector<16xf32>
    %26 = vector.shape_cast %25 : vector<16xf32> to vector<16x1xf32>
    %27 = arith.subf %14, %22 : vector<16x1xf32>
    %28 = arith.subf %22, %7 : vector<16x1xf32>
    %29 = math.exp %28 : vector<16x1xf32>
    %30 = tpu.reciprocal %12 : vector<16x1xf32> -> vector<16x1xf32>
    %31 = arith.mulf %29, %30 : vector<16x1xf32>
    %cst_9 = arith.constant 1.000000e+00 : f32
    %32 = vector.broadcast %cst_9 : f32 to vector<16x1xf32>
    %33 = arith.subf %32, %31 : vector<16x1xf32>
    %34 = arith.mulf %33, %33 : vector<16x1xf32>
    %c0_10 = arith.constant 0 : index
    %c0_11 = arith.constant 0 : index
    %35 = vector.load %arg5[%c0_10, %c0_11] : memref<16x1xf32, #tpu.memory_space<vmem>>, vector<16x1xf32>
    %36 = arith.mulf %26, %34 : vector<16x1xf32>
    %37 = arith.mulf %36, %27 : vector<16x1xf32>
    %38 = arith.addf %35, %37 : vector<16x1xf32>
    %c0_12 = arith.constant 0 : index
    %c0_13 = arith.constant 0 : index
    %39 = vector.load %arg5[%c0_12, %c0_13] : memref<16x1xf32, #tpu.memory_space<vmem>>, vector<16x1xf32>
    tpu.vector_store %arg5[%c0_12, %c0_13], %38 {strides = array<i32>} : memref<16x1xf32, #tpu.memory_space<vmem>>, vector<16x1xf32>,
    return
  }
  func.func @transform_0(%arg0: i32, %arg1: i32) -> (i32, i32) {
    %c1_i32 = arith.constant 1 : i32
    %0 = arith.muli %arg0, %c1_i32 : i32
    %1 = arith.addi %0, %arg1 : i32
    %c0_i32 = arith.constant 0 : i32
    %c0_i32_0 = arith.constant 0 : i32
    return %1, %c0_i32 : i32, i32
  }
  func.func @transform_1(%arg0: i32, %arg1: i32) -> (i32, i32) {
    %c1_i32 = arith.constant 1 : i32
    %0 = arith.muli %arg0, %c1_i32 : i32
    %1 = arith.addi %0, %arg1 : i32
    %c0_i32 = arith.constant 0 : i32
    %c0_i32_0 = arith.constant 0 : i32
    return %1, %c0_i32 : i32, i32
  }
  func.func @transform_2(%arg0: i32, %arg1: i32) -> (i32, i32) {
    %c0_i32 = arith.constant 0 : i32
    %c0_i32_0 = arith.constant 0 : i32
    %c0_i32_1 = arith.constant 0 : i32
    return %c0_i32, %c0_i32_0 : i32, i32
  }
  func.func @transform_3(%arg0: i32, %arg1: i32) -> (i32, i32) {
    %c0_i32 = arith.constant 0 : i32
    %c0_i32_0 = arith.constant 0 : i32
    return %arg0, %c0_i32 : i32, i32
  }
}

</mosaic_0001>

<llo_original>
// kernel: tpu_custom_call.1
$region0: #{tpu_custom_call.1}
  #allocation0 [shape = 'u32[]', space=smem, size = 0x4, offset = 0x4, fixed_abs, tag = 'smem constant byte address 0x4 - core index']
  #allocation1 [shape = 'u32[144,128]{1,0:T(1,128)}', space=vmem, size = 0x12000, scoped, tag = 'internal scratch']
  %s0 = inlined_call_operand.vmem [shape: f32[32,8], index: 0, kind: input, shape index: {}]
  %s1 = inlined_call_operand.vmem [shape: s32[32,1], index: 1, kind: input, shape index: {}]
  %s2 = inlined_call_operand.vmem [shape: f32[1,8], index: 2, kind: input, shape index: {}]
  %s3 = inlined_call_operand.vmem [shape: f32[32,1], index: 3, kind: output, shape index: {}]
  %s4 = sld [smem:[#allocation0]]
  $region49: #{tpu_custom_call.1} parent=0
    _
  %s6 = ssub.s32 1, %s4
  %s7 = scalar_select 0, %s6, %s4
  loop: start=0, step=1, limit=4
  $region2: #{tpu_custom_call.1} parent=0 // loop_pre_header
    _
  $region3: #{tpu_custom_call.1} parent=0 // loop_header
    %s9 = sphi 0, %s13
    %p10 = scmp.ge.s32.totalorder %s9, 4
    %s16 = sphi 0, %s28
    %s17 = sphi 0, %s24
    %s18 = sphi 0, %s16
    %s19 = sphi 0, %s17
    %s20 = sphi 0, %s18
    %s21 = sphi 0, %s19
    %s33 = sphi 0, %s35
    %s36 = sphi 0, %s33
    %s37 = sphi 0, %s36
    %s53 = sphi 0, %s37
    %s61 = sphi 0, %s63
    %s64 = sphi 0, %s61
    %s65 = sphi 0, %s64
    %s81 = sphi 0, %s65
    %s85 = sphi 0, %s85
    %s87 = sphi 0, %s85
    %s88 = sphi 0, %s87
    %s102 = sphi 0, %s88
    %s108 = sphi 0, %s110
    %s111 = sphi 0, %s108
    %s112 = sphi 0, %s111
    %s128 = sphi 0, %s112
  $region4: #{tpu_custom_call.1} parent=0 // loop_header_branch
    %12 = sbr.rel (%p10) target = $region8
  $region5: #{tpu_custom_call.1} parent=0 // loop_body
    %s14 = ssub.s32 %s9, 1
    %s15 = ssub.s32 %s9, 2
    %s22 = sadd.s32 1, %s17
    %p23 = scmp.ge.s32.totalorder %s22, 1
    %s24 = scalar_select %p23, 0, %s22
    %s25 = sadd.s32 1, %s16
    %s26 = scalar_select %p23, %s25, %s16
    %p27 = scmp.ge.s32.totalorder %s26, 2
    %s28 = scalar_select %p27, 0, %s26
    %s29 = sadd.s32 %s16, %s17
    %s30 = sadd.s32 %s28, %s24
    %s31 = ssub.s32 %s29, %s30
    %p32 = scmp.eq.s32.totalorder %s31, 0
    %s34 = sadd.s32 %s33, 1
    %s35 = scalar_select %p32, %s33, %s34
    %p38 = pneg %p32
    %p39 = scmp.eq.s32.totalorder %s9, 1
    %p40 = por %p38, %p39
    %p41 = scmp.ne.s32.totalorder %s33, %s36
    %p42 = scmp.eq.s32.totalorder %s9, 0
    %p43 = por %p41, %p42
    %p44 = scmp.ne.s32.totalorder %s33, %s36
    %p45 = scmp.eq.s32.totalorder %s14, 1
    %p46 = por %p44, %p45
    %p47 = scmp.ne.s32.totalorder %s36, %s37
    %p48 = scmp.eq.s32.totalorder %s14, 0
    %p49 = por %p47, %p48
    %p50 = scmp.ne.s32.totalorder %s36, %s37
    %p51 = scmp.eq.s32.totalorder %s15, 1
    %p52 = por %p50, %p51
    %p54 = scmp.ne.s32.totalorder %s37, %s53
    %p55 = scmp.eq.s32.totalorder %s15, 0
    %p56 = por %p54, %p55
    %s57 = sadd.s32 %s16, %s17
    %s58 = sadd.s32 %s28, %s24
    %s59 = ssub.s32 %s57, %s58
    %p60 = scmp.eq.s32.totalorder %s59, 0
    %s62 = sadd.s32 %s61, 1
    %s63 = scalar_select %p60, %s61, %s62
    %p66 = pneg %p60
    %p67 = scmp.eq.s32.totalorder %s9, 1
    %p68 = por %p66, %p67
    %p69 = scmp.ne.s32.totalorder %s61, %s64
    %p70 = scmp.eq.s32.totalorder %s9, 0
    %p71 = por %p69, %p70
    %p72 = scmp.ne.s32.totalorder %s61, %s64
    %p73 = scmp.eq.s32.totalorder %s14, 1
    %p74 = por %p72, %p73
    %p75 = scmp.ne.s32.totalorder %s64, %s65
    %p76 = scmp.eq.s32.totalorder %s14, 0
    %p77 = por %p75, %p76
    %p78 = scmp.ne.s32.totalorder %s64, %s65
    %p79 = scmp.eq.s32.totalorder %s15, 1
    %p80 = por %p78, %p79
    %p82 = scmp.ne.s32.totalorder %s65, %s81
    %p83 = scmp.eq.s32.totalorder %s15, 0
    %p84 = por %p82, %p83
    %s86 = sadd.s32 %s85, 1
    %p89 = scmp.eq.s32.totalorder %s9, 1
    %p90 = scmp.ne.s32.totalorder %s85, %s87
    %p91 = scmp.eq.s32.totalorder %s9, 0
    %p92 = por %p90, %p91
    %p93 = scmp.ne.s32.totalorder %s85, %s87
    %p94 = scmp.eq.s32.totalorder %s14, 1
    %p95 = por %p93, %p94
    %p96 = scmp.ne.s32.totalorder %s87, %s88
    %p97 = scmp.eq.s32.totalorder %s14, 0
    %p98 = por %p96, %p97
    %p99 = scmp.ne.s32.totalorder %s87, %s88
    %p100 = scmp.eq.s32.totalorder %s15, 1
    %p101 = por %p99, %p100
    %p103 = scmp.ne.s32.totalorder %s88, %s102
    %p104 = scmp.eq.s32.totalorder %s15, 0
    %p105 = por %p103, %p104
    %s106 = ssub.s32 %s16, %s28
    %p107 = scmp.eq.s32.totalorder %s106, 0
    %s109 = sadd.s32 %s108, 1
    %s110 = scalar_select %p107, %s108, %s109
    %p113 = pneg %p107
    %p114 = scmp.eq.s32.totalorder %s9, 1
    %p115 = por %p113, %p114
    %p116 = scmp.ne.s32.totalorder %s108, %s111
    %p117 = scmp.eq.s32.totalorder %s9, 0
    %p118 = por %p116, %p117
    %p119 = scmp.ne.s32.totalorder %s108, %s111
    %p120 = scmp.eq.s32.totalorder %s14, 1
    %p121 = por %p119, %p120
    %p122 = scmp.ne.s32.totalorder %s111, %s112
    %p123 = scmp.eq.s32.totalorder %s14, 0
    %p124 = por %p122, %p123
    %p125 = scmp.ne.s32.totalorder %s111, %s112
    %p126 = scmp.eq.s32.totalorder %s15, 1
    %p127 = por %p125, %p126
    %p129 = scmp.ne.s32.totalorder %s112, %s128
    %p130 = scmp.eq.s32.totalorder %s15, 0
    %p131 = por %p129, %p130
    %p132 = scmp.le.s32.totalorder 1, %s9
    %p133 = scmp.lt.s32.totalorder %s9, 3
    %p134 = pnand %p132, %p133
    %p135 = pneg %p134
    // Predicated region
    $region9: #{tpu_custom_call.1} parent=5 // pred_check
      _
    $region10: #{tpu_custom_call.1} parent=5 // pred_check_branch
      %137 = sbr.rel (%p134) target = $region12
    $region11: #{tpu_custom_call.1} parent=5 // pred_region
      %s138 = ssub.s32 %s9, 1
      // Predicated region
      $region13: #{tpu_custom_call.1} parent=11 // pred_check
        %p139 = pneg %p98
      $region14: #{tpu_custom_call.1} parent=11 // pred_check_branch
        %141 = sbr.rel (%p139) target = $region16
      $region15: #{tpu_custom_call.1} parent=11 // pred_region
        _
      $region16: #{tpu_custom_call.1} parent=11 // pred_fallthru
        _
    $region12: #{tpu_custom_call.1} parent=5 // pred_fallthru
      _
    %p142 = scmp.lt.s32.totalorder %s9, 2
    // Predicated region
    $region17: #{tpu_custom_call.1} parent=5 // pred_check
      %p143 = pneg %p142
    $region18: #{tpu_custom_call.1} parent=5 // pred_check_branch
      %145 = sbr.rel (%p143) target = $region20
    $region19: #{tpu_custom_call.1} parent=5 // pred_region
      // Predicated region
      $region21: #{tpu_custom_call.1} parent=19 // pred_check
        %p146 = pneg %p43
      $region22: #{tpu_custom_call.1} parent=19 // pred_check_branch
        %148 = sbr.rel (%p146) target = $region24
      $region23: #{tpu_custom_call.1} parent=19 // pred_region
        %s149 = sadd.s32 %s16, %s17
        %s150 = smul.u32 2, %s149
        %p151 = scmp.lt.s32.totalorder %s150, 3
        %s152 = scalar_select %p151, %s150, 3
        %s153 = smul.addr %s152, 8
        %s154 = scalar_lea.vmem %s0, %s153
        %s155 = sadd.s32 %s16, %s17
        %s156 = smul.u32 2, %s155
      $region24: #{tpu_custom_call.1} parent=19 // pred_fallthru
        _
      // Predicated region
      $region25: #{tpu_custom_call.1} parent=19 // pred_check
        %p157 = pneg %p71
      $region26: #{tpu_custom_call.1} parent=19 // pred_check_branch
        %159 = sbr.rel (%p157) target = $region28
      $region27: #{tpu_custom_call.1} parent=19 // pred_region
        %s160 = sadd.s32 %s16, %s17
        %s161 = smul.u32 2, %s160
        %p162 = scmp.lt.s32.totalorder %s161, 3
        %s163 = scalar_select %p162, %s161, 3
        %s164 = smul.addr %s163, 8
        %s165 = scalar_lea.vmem %s1, %s164
        %s166 = sadd.s32 %s16, %s17
        %s167 = smul.u32 2, %s166
      $region28: #{tpu_custom_call.1} parent=19 // pred_fallthru
        _
    $region20: #{tpu_custom_call.1} parent=5 // pred_fallthru
      _
    %p168 = scmp.le.s32.totalorder 1, %s9
    %p169 = scmp.lt.s32.totalorder %s9, 3
    %p170 = pnand %p168, %p169
    %p171 = pneg %p170
    // Predicated region
    $region29: #{tpu_custom_call.1} parent=5 // pred_check
      _
    $region30: #{tpu_custom_call.1} parent=5 // pred_check_branch
      %173 = sbr.rel (%p170) target = $region32
    $region31: #{tpu_custom_call.1} parent=5 // pred_region
      %s174 = ssub.s32 %s9, 1
      %s175 = sadd.s32 %s18, %s19
      %s176 = smul.u32 2, %s175
      %p177 = scmp.lt.s32.totalorder %s176, 3
      %s178 = scalar_select %p177, %s176, 3
      %s179 = smul.addr %s178, 8
      %s180 = scalar_lea.vmem %s0, %s179
      %p181 = pneg %p49
      %p182 = pneg %p46
      %s183 = sadd.s32 %s18, %s19
      %s184 = smul.u32 2, %s183
      %p185 = scmp.lt.s32.totalorder %s184, 3
      %s186 = scalar_select %p185, %s184, 3
      %s187 = smul.addr %s186, 8
      %s188 = scalar_lea.vmem %s1, %s187
      %p189 = pneg %p77
      %p190 = pneg %p74
      %p191 = pneg %p98
      %p192 = pneg %p95
      %p193 = pneg %p124
      %p194 = pneg %p121
      %s195 = smul.u32 2, %s18
      %p196 = scmp.lt.s32.totalorder %s195, 3
      %s197 = scalar_select %p196, %s195, 3
      %s198 = smul.addr %s197, 8
      %s199 = scalar_lea.vmem %s3, %s198
      %s200 = sadd.s32 %s18, %s19
      %s201 = smul.u32 2, %s200
      %p202 = scmp.lt.s32.totalorder %s201, 3
      %s203 = scalar_select %p202, %s201, 3
      %s204 = smul.addr %s203, 8
      %s205 = scalar_lea.vmem %s0, %s204
      %s206 = sadd.s32 %s18, %s19
      %s207 = smul.u32 2, %s206
      %s208 = sadd.s32 %s18, %s19
      %s209 = smul.u32 2, %s208
      %p210 = scmp.lt.s32.totalorder %s209, 3
      %s211 = scalar_select %p210, %s209, 3
      %s212 = smul.addr %s211, 8
      %s213 = scalar_lea.vmem %s1, %s212
      %s214 = sadd.s32 %s18, %s19
      %s215 = smul.u32 2, %s214
      %s216 = smul.u32 2, %s18
      %p217 = scmp.lt.s32.totalorder %s216, 3
      %s218 = scalar_select %p217, %s216, 3
      %s219 = smul.addr %s218, 8
      %s220 = scalar_lea.vmem %s3, %s219
      %s221 = smul.u32 2, %s18
      %p222 = scmp.eq.s32.totalorder %s19, 0
      // Predicated region
      $region33: #{tpu_custom_call.1} parent=31 // pred_check
        %p223 = pneg %p222
      $region34: #{tpu_custom_call.1} parent=31 // pred_check_branch
        %225 = sbr.rel (%p223) target = $region36
      $region35: #{tpu_custom_call.1} parent=31 // pred_region
        %vm226 = vcmask 7168
        %227 = vst.msk [vmem:[%s220] sm:$0xff] %vm226, 0.0
        %228 = vst.msk [vmem:[%s220 + $0x8] sm:$0xff] %vm226, 0.0
      $region36: #{tpu_custom_call.1} parent=31 // pred_fallthru
        _
      %v229 = vld [vmem:[%s205] sm:$0xff]
      %v230 = vld [vmem:[%s205 + $0x8] sm:$0xff]
      %v231 = vld [vmem:[%s213] sm:$0xff]
      %v232 = vld [vmem:[%s213 + $0x8] sm:$0xff]
      %v233 = vld [vmem:[%s2] sm:$0x1]
      %vm234 = vcmask 64512
      %v235 = vsel %vm234, %v229, -inf
      %236 = vmax.xlane.f32.xlu0 %v235
      %v237 = vpop.xlane.xlu0 %236
      %v238 = vsel %vm234, %v230, -inf
      %239 = vmax.xlane.f32.xlu0 %v238
      %v240 = vpop.xlane.xlu0 %239
      %v241 = vsub.f32 %v229, %v237
      %v242 = vsub.f32 %v230, %v240
      %v243 = vmul.f32 %v241, 1.442695
      %v244 = vpow.pop %v243
      %v245 = vmul.f32 %v242, 1.442695
      %v246 = vpow.pop %v245
      %v247 = vsel %vm234, %v244, 0.0
      %248 = vadd.xlane.f32.xlu0 %v247
      %v249 = vpop.xlane.xlu0 %248
      %v250 = vsel %vm234, %v246, 0.0
      %251 = vadd.xlane.f32.xlu0 %v250
      %v252 = vpop.xlane.xlu0 %251
      %v253 = vlog2.pop %v249
      %v254 = vmul.f32 %v253, 0.6931472
      %v255 = vlog2.pop %v252
      %v256 = vmul.f32 %v255, 0.6931472
      %v257 = vadd.f32 %v237, %v254
      %v258 = vadd.f32 %v240, %v256
      %v259 = vlaneseq
      %v260 = vand.u32 %v259, 127
      %261 = vset.pattern.permute.xlu0 0
      %262 = vperm.xlu0 %261, %v231
      %v263 = vpop.permute.xlu0 %262
      %264 = vset.pattern.permute.xlu0 0
      %265 = vperm.xlu0 %264, %v232
      %v266 = vpop.permute.xlu0 %265
      %vm267 = vcmp.eq.s32.totalorder %v260, %v263
      %vm268 = vcmp.eq.s32.totalorder %v260, %v266
      %v269 = vsel %vm267, 1, 0
      %v270 = vsel %vm268, 1, 0
      %v271 = vcvt.s32.f32 %v269
      %v272 = vcvt.s32.f32 %v270
      %v273 = vmul.f32 %v271, %v229
      %v274 = vmul.f32 %v272, %v230
      %v275 = vsel %vm234, %v273, 0.0
      %276 = vadd.xlane.f32.xlu0 %v275
      %v277 = vpop.xlane.xlu0 %276
      %v278 = vsel %vm234, %v274, 0.0
      %279 = vadd.xlane.f32.xlu0 %v278
      %v280 = vpop.xlane.xlu0 %279
      %v282 = vlaneseq
      %v283 = vshrl.u32 %v282, 7
      %v284 = vsub.s32 0, %v283
      %v285 = vrot.slane %v233, %v284
      %v287 = vmul.f32 %v271, %v285
      %v288 = vmul.f32 %v272, %v285
      %v289 = vsel %vm234, %v287, 0.0
      %290 = vadd.xlane.f32.xlu0 %v289
      %v291 = vpop.xlane.xlu0 %290
      %v292 = vsel %vm234, %v288, 0.0
      %293 = vadd.xlane.f32.xlu0 %v292
      %v294 = vpop.xlane.xlu0 %293
      %v295 = vsub.f32 %v257, %v277
      %v296 = vsub.f32 %v258, %v280
      %v297 = vsub.f32 %v277, %v237
      %v298 = vsub.f32 %v280, %v240
      %v299 = vmul.f32 %v297, 1.442695
      %v300 = vpow.pop %v299
      %v301 = vmul.f32 %v298, 1.442695
      %v302 = vpow.pop %v301
      %v303 = vrcp.pop %v249
      %v304 = vrcp.pop %v252
      %v305 = vmul.f32 %v300, %v303
      %v306 = vmul.f32 %v302, %v304
      %v307 = vsub.f32 1.0, %v305
      %v308 = vsub.f32 1.0, %v306
      %v309 = vmul.f32 %v307, %v307
      %v310 = vmul.f32 %v308, %v308
      %v311 = vld [vmem:[%s220] sm:$0xff]
      %v312 = vld [vmem:[%s220 + $0x8] sm:$0xff]
      %v313 = vmul.f32 %v291, %v309
      %v314 = vmul.f32 %v294, %v310
      %v315 = vmul.f32 %v313, %v295
      %v316 = vmul.f32 %v314, %v296
      %v317 = vadd.f32 %v311, %v315
      %v318 = vadd.f32 %v312, %v316
      %vm319 = vcmask 7168
      %320 = vst.msk [vmem:[%s220] sm:$0xff] %vm319, %v317
      %321 = vst.msk [vmem:[%s220 + $0x8] sm:$0xff] %vm319, %v318
      %s322 = smul.u32 2, %s18
      %p323 = scmp.lt.s32.totalorder %s322, 3
      %s324 = scalar_select %p323, %s322, 3
      %s325 = smul.addr %s324, 8
      %s326 = scalar_lea.vmem %s3, %s325
      // Predicated region
      $region37: #{tpu_custom_call.1} parent=31 // pred_check
        %p327 = pneg %p121
      $region38: #{tpu_custom_call.1} parent=31 // pred_check_branch
        %329 = sbr.rel (%p327) target = $region40
      $region39: #{tpu_custom_call.1} parent=31 // pred_region
        %s330 = smul.u32 2, %s18
      $region40: #{tpu_custom_call.1} parent=31 // pred_fallthru
        _
    $region32: #{tpu_custom_call.1} parent=5 // pred_fallthru
      _
    %p331 = scmp.le.s32.totalorder 2, %s9
    // Predicated region
    $region41: #{tpu_custom_call.1} parent=5 // pred_check
      %p332 = pneg %p331
    $region42: #{tpu_custom_call.1} parent=5 // pred_check_branch
      %334 = sbr.rel (%p332) target = $region44
    $region43: #{tpu_custom_call.1} parent=5 // pred_region
      %s335 = ssub.s32 %s9, 2
      // Predicated region
      $region45: #{tpu_custom_call.1} parent=43 // pred_check
        %p336 = pneg %p127
      $region46: #{tpu_custom_call.1} parent=43 // pred_check_branch
        %338 = sbr.rel (%p336) target = $region48
      $region47: #{tpu_custom_call.1} parent=43 // pred_region
        %s339 = smul.u32 2, %s20
        %p340 = scmp.lt.s32.totalorder %s339, 3
        %s341 = scalar_select %p340, %s339, 3
        %s342 = smul.addr %s341, 8
        %s343 = scalar_lea.vmem %s3, %s342
      $region48: #{tpu_custom_call.1} parent=43 // pred_fallthru
        _
    $region44: #{tpu_custom_call.1} parent=5 // pred_fallthru
      _
  $region6: #{tpu_custom_call.1} parent=0 // loop_footer
    %s13 = sadd.s32 1, %s9
  $region7: #{tpu_custom_call.1} parent=0 // loop_footer_branch
    %8 = sbr.rel target = $region3
  $region8: #{tpu_custom_call.1} parent=0 // loop_exit
    _

</llo_original>
